<compile_context>
chip_gen: v6e
topology: v6e:2x2x1
jax: 0.10.0
libtpu: 0.0.40
codegen_flags: <defaults>
</compile_context>

<pallas_src>
import functools

import jax
import jax.numpy as jnp
from jax.experimental import pallas as pl
from jax.experimental.pallas import tpu as pltpu


_VMEM_LIMIT_BYTES = 32 * 1024 * 1024  # comfortably within v5e/v6e/v7x scoped VMEM


def _round_up(x, m):
    return pl.cdiv(x, m) * m


# ---------------------------------------------------------------------------
# Phase 1: per-metapath scores -> softmax weights beta, shape (1, M) f32.
# ---------------------------------------------------------------------------
def _score_softmax_kernel(z_ref, w1_ref, b1_ref, w2_ref, beta_ref, *,
                          n_total, n_padded):
    i = pl.program_id(0)

    @pl.when(i == 0)
    def _init():
        beta_ref[...] = jnp.zeros_like(beta_ref)

    M, tn, D = z_ref.shape
    H = w1_ref.shape[1]

    # One fused MXU matmul over all metapaths of this node tile:
    #   (M*tn, D) @ (D, H), f32 accumulation.
    z2 = z_ref[...].reshape(M * tn, D)
    h = jnp.tanh(
        jnp.dot(z2, w1_ref[...], preferred_element_type=jnp.float32)
        + b1_ref[...]                                   # (1, H) broadcast
    )                                                   # (M*tn, H) f32
    s = (h * w2_ref[...]).reshape(M, tn, H)             # (M, tn, H) f32

    if n_padded != n_total:
        # Mask contributions of padded node rows (only the last tile has any).
        node = jax.lax.broadcasted_iota(jnp.int32, (1, tn, 1), 1) + i * tn
        s = jnp.where(node < n_total, s, 0.0)

    per_m_h = jnp.sum(s, axis=1)                        # (M, H)  sublane reduce
    partial = jnp.sum(per_m_h, axis=1)                  # (M,)    lane reduce
    beta_ref[...] += partial.reshape(1, M)

    @pl.when(i == pl.num_programs(0) - 1)
    def _finalize():
        w = beta_ref[...] * (1.0 / float(n_total))       # mean over nodes
        w = w - jnp.max(w, axis=1, keepdims=True)        # stable softmax over M
        e = jnp.exp(w)
        beta_ref[...] = e / jnp.sum(e, axis=1, keepdims=True)


# ---------------------------------------------------------------------------
# Phase 2: out[n, :] = sum_m beta[m] * z[m, n, :]
# ---------------------------------------------------------------------------
def _apply_kernel(beta_ref, z_ref, out_ref):
    M = z_ref.shape[0]
    # beta_ref holds M f32 scalars in SMEM; scalar * tile is a cheap splat and
    # the f32 accumulator stays resident (M is tiny & static -> unrolled adds).
    acc = beta_ref[0] * z_ref[0]
    for m in range(1, M):
        acc = acc + beta_ref[m] * z_ref[m]
    out_ref[...] = acc.astype(out_ref.dtype)


def semantic_attention(z, w1, b1, w2, *, tile_n=512):
    """z: (N, M, D); w1: (D, H); b1: (1, H); w2: (1, H) -> (N, D)."""
    N, M, D = z.shape
    H = w1.shape[1]
    itemsize = z.dtype.itemsize

    # (M, N, D): every metapath slab is contiguous and lane-dense over D.
    z_mnd = jnp.transpose(z, (1, 0, 2))

    tile_n = _round_up(max(8, min(tile_n, _round_up(N, 8))), 8)
    n_pad = _round_up(N, tile_n)
    if n_pad != N:
        z_mnd = jnp.pad(z_mnd, ((0, 0), (0, n_pad - N), (0, 0)))
    n_tiles = n_pad // tile_n

    const = lambda i: (0, 0)

    # --- Phase 1: beta = softmax(mean_n score), shape (1, M) f32 ------------
    score_cost = pl.CostEstimate(
        flops=2 * n_pad * M * D * H + 3 * n_pad * M * H,
        transcendentals=n_pad * M * H,
        bytes_accessed=n_pad * M * D * itemsize
        + (D * H + 2 * H) * w1.dtype.itemsize + 4 * M,
    )
    beta = pl.pallas_call(
        functools.partial(_score_softmax_kernel, n_total=N, n_padded=n_pad),
        out_shape=jax.ShapeDtypeStruct((1, M), jnp.float32),
        grid_spec=pltpu.PrefetchScalarGridSpec(
            num_scalar_prefetch=0,
            grid=(n_tiles,),
            in_specs=[
                pl.BlockSpec((M, tile_n, D), lambda i: (0, i, 0)),
                pl.BlockSpec((D, H), const),
                pl.BlockSpec((1, H), const),
                pl.BlockSpec((1, H), const),
            ],
            out_specs=pl.BlockSpec((1, M), const),
        ),
        compiler_params=pltpu.CompilerParams(
            dimension_semantics=("arbitrary",),
            vmem_limit_bytes=_VMEM_LIMIT_BYTES,
        ),
        cost_estimate=score_cost,
    )(z_mnd, w1, b1, w2)

    # --- Phase 2: out = sum_m beta[m] * z[m] ---------------------------------
    apply_cost = pl.CostEstimate(
        flops=2 * n_pad * M * D,
        transcendentals=0,
        bytes_accessed=n_pad * M * D * itemsize + n_pad * D * itemsize + 4 * M,
    )
    out_pad = pl.pallas_call(
        _apply_kernel,
        out_shape=jax.ShapeDtypeStruct((n_pad, D), z.dtype),
        grid_spec=pltpu.PrefetchScalarGridSpec(
            num_scalar_prefetch=0,
            grid=(n_tiles,),
            in_specs=[
                pl.BlockSpec(memory_space=pltpu.MemorySpace.SMEM),     # beta (M,)
                pl.BlockSpec((M, tile_n, D), lambda i: (0, i, 0)),     # z slab
            ],
            out_specs=pl.BlockSpec((tile_n, D), lambda i: (i, 0)),
        ),
        compiler_params=pltpu.CompilerParams(
            dimension_semantics=("parallel",),
            vmem_limit_bytes=_VMEM_LIMIT_BYTES,
        ),
        cost_estimate=apply_cost,
    )(beta.reshape(M), z_mnd)

    return out_pad[:N] if n_pad != N else out_pad


def semantic_attention_ref(z, w1, b1, w2):
    """Plain-JAX reference matching the PyTorch module."""
    hp = jax.lax.Precision.HIGHEST
    h = jnp.tanh(jnp.einsum("nmd,dh->nmh", z, w1, precision=hp) + b1[0])
    w = jnp.einsum("nmh,h->nm", h, w2[0], precision=hp).mean(axis=0)   # (M,)
    beta = jax.nn.softmax(w, axis=0)                                   # (M,)
    return jnp.einsum("m,nmd->nd", beta, z, precision=hp)              # (N, D)


if __name__ == "__main__":
    # Small but lane-dense shapes: N=256 nodes, M=4 metapaths,
    # in_size D=128, hidden_size H=128 (the nn.Module default).
    N, M, D, H = 256, 4, 128, 128

    key = jax.random.PRNGKey(0)
    k_z, k_w1, k_b1, k_w2 = jax.random.split(key, 4)

    z = jax.random.normal(k_z, (N, M, D), dtype=jnp.float32)
    # nn.Linear params (W1:(H, D), b1:(H,), W2:(1, H)) stored pre-transposed /
    # reshaped for the kernel layout.
    w1 = jax.random.normal(k_w1, (D, H), dtype=jnp.float32) * 0.1
    b1 = jax.random.normal(k_b1, (1, H), dtype=jnp.float32) * 0.1
    w2 = jax.random.normal(k_w2, (1, H), dtype=jnp.float32) * 0.1

    # tile_n=128 -> grid of 2 node tiles, exercising the accumulator path.
    out = semantic_attention(z, w1, b1, w2, tile_n=128)
    jax.block_until_ready(out)

    ref = semantic_attention_ref(z, w1, b1, w2)
    assert out.shape == (N, D)
    err = jnp.max(jnp.abs(out - ref))
    assert jnp.allclose(out, ref, atol=1e-3, rtol=1e-3), f"max abs err {err}"
    print("KERNEL_OK")
</pallas_src>

<mosaic_0001>
module attributes {stable_mosaic.version = 11 : i64} {
  func.func @_score_softmax_kernel(%arg0: i32, %arg1: memref<4x128x128xf32, #tpu.memory_space<vmem>>, %arg2: memref<128x128xf32, #tpu.memory_space<vmem>>, %arg3: memref<1x128xf32, #tpu.memory_space<vmem>>, %arg4: memref<1x128xf32, #tpu.memory_space<vmem>>, %arg5: memref<1x4xf32, #tpu.memory_space<vmem>>) attributes {dimension_semantics = [#tpu.dimension_semantics<arbitrary>], iteration_bounds = array<i64: 2>, scalar_prefetch = 0 : i64, scratch_operands = 0 : i64, tpu.core_type = #tpu.core_type<tc>, window_params = [{transform_indices = @transform_0, window_bounds = array<i64: 4, 128, 128>}, {pipeline_mode = #tpu.pipeline_mode<synchronous>, transform_indices = @transform_1, window_bounds = array<i64: 128, 128>}, {pipeline_mode = #tpu.pipeline_mode<synchronous>, transform_indices = @transform_2, window_bounds = array<i64: 1, 128>}, {pipeline_mode = #tpu.pipeline_mode<synchronous>, transform_indices = @transform_3, window_bounds = array<i64: 1, 128>}, {pipeline_mode = #tpu.pipeline_mode<synchronous>, transform_indices = @transform_4, window_bounds = array<i64: 1, 4>}]} {
    %c0_i32 = arith.constant 0 : i32
    %0 = arith.cmpi eq, %arg0, %c0_i32 : i32
    %1 = arith.extui %0 : i1 to i32
    %c0_i32_0 = arith.constant 0 : i32
    %2 = arith.cmpi ne, %1, %c0_i32_0 : i32
    scf.if %2 {
      %cst_16 = arith.constant 0.000000e+00 : f32
      %24 = vector.broadcast %cst_16 : f32 to vector<1x4xf32>
      %c0_17 = arith.constant 0 : index
      %c0_18 = arith.constant 0 : index
      %25 = vector.load %arg5[%c0_17, %c0_18] : memref<1x4xf32, #tpu.memory_space<vmem>>, vector<1x4xf32>
      tpu.vector_store %arg5[%c0_17, %c0_18], %24 {strides = array<i32>} : memref<1x4xf32, #tpu.memory_space<vmem>>, vector<1x4xf32>,
    } else {
    }
    %c0 = arith.constant 0 : index
    %c0_1 = arith.constant 0 : index
    %c0_2 = arith.constant 0 : index
    %3 = vector.load %arg1[%c0, %c0_1, %c0_2] : memref<4x128x128xf32, #tpu.memory_space<vmem>>, vector<4x128x128xf32>
    %4 = vector.shape_cast %3 : vector<4x128x128xf32> to vector<512x128xf32>
    %c0_3 = arith.constant 0 : index
    %c0_4 = arith.constant 0 : index
    %5 = vector.load %arg2[%c0_3, %c0_4] : memref<128x128xf32, #tpu.memory_space<vmem>>, vector<128x128xf32>
    %cst = arith.constant dense<0.000000e+00> : vector<512x128xf32>
    %6 = tpu.matmul %4, %5, %cst {dimension_numbers = #tpu.dot_dimension_numbers<[1], [0], [0], [1], [0, 0, 1, 1], [], []>} : vector<512x128xf32>, vector<128x128xf32>, vector<512x128xf32> -> vector<512x128xf32>
    %c0_5 = arith.constant 0 : index
    %c0_6 = arith.constant 0 : index
    %7 = vector.load %arg3[%c0_5, %c0_6] : memref<1x128xf32, #tpu.memory_space<vmem>>, vector<1x128xf32>
    %8 = vector.broadcast %7 : vector<1x128xf32> to vector<512x128xf32>
    %9 = arith.addf %6, %8 : vector<512x128xf32>
    %10 = math.tanh %9 : vector<512x128xf32>
    %c0_7 = arith.constant 0 : index
    %c0_8 = arith.constant 0 : index
    %11 = vector.load %arg4[%c0_7, %c0_8] : memref<1x128xf32, #tpu.memory_space<vmem>>, vector<1x128xf32>
    %12 = vector.broadcast %11 : vector<1x128xf32> to vector<512x128xf32>
    %13 = arith.mulf %10, %12 : vector<512x128xf32>
    %14 = vector.shape_cast %13 : vector<512x128xf32> to vector<4x128x128xf32>
    %cst_9 = arith.constant dense<0.000000e+00> : vector<4x128xf32>
    %15 = vector.multi_reduction <add>, %14, %cst_9 [1] : vector<4x128x128xf32> to vector<4x128xf32>
    %cst_10 = arith.constant dense<0.000000e+00> : vector<4xf32>
    %16 = vector.multi_reduction <add>, %15, %cst_10 [1] : vector<4x128xf32> to vector<4xf32>
    %c0_11 = arith.constant 0 : index
    %c0_12 = arith.constant 0 : index
    %17 = vector.load %arg5[%c0_11, %c0_12] : memref<1x4xf32, #tpu.memory_space<vmem>>, vector<1x4xf32>
    %18 = vector.shape_cast %16 : vector<4xf32> to vector<1x4xf32>
    %19 = arith.addf %17, %18 : vector<1x4xf32>
    %c0_13 = arith.constant 0 : index
    %c0_14 = arith.constant 0 : index
    %20 = vector.load %arg5[%c0_13, %c0_14] : memref<1x4xf32, #tpu.memory_space<vmem>>, vector<1x4xf32>
    tpu.vector_store %arg5[%c0_13, %c0_14], %19 {strides = array<i32>} : memref<1x4xf32, #tpu.memory_space<vmem>>, vector<1x4xf32>,
    %c1_i32 = arith.constant 1 : i32
    %21 = arith.cmpi eq, %arg0, %c1_i32 : i32
    %22 = arith.extui %21 : i1 to i32
    %c0_i32_15 = arith.constant 0 : i32
    %23 = arith.cmpi ne, %22, %c0_i32_15 : i32
    scf.if %23 {
      %c0_16 = arith.constant 0 : index
      %c0_17 = arith.constant 0 : index
      %24 = vector.load %arg5[%c0_16, %c0_17] : memref<1x4xf32, #tpu.memory_space<vmem>>, vector<1x4xf32>
      %cst_18 = arith.constant 3.906250e-03 : f32
      %25 = vector.broadcast %cst_18 : f32 to vector<1x4xf32>
      %26 = arith.mulf %24, %25 : vector<1x4xf32>
      %cst_19 = arith.constant dense<0xFF800000> : vector<1xf32>
      %27 = vector.multi_reduction <maximumf>, %26, %cst_19 [1] : vector<1x4xf32> to vector<1xf32>
      %28 = vector.shape_cast %27 : vector<1xf32> to vector<1x1xf32>
      %29 = vector.broadcast %28 : vector<1x1xf32> to vector<1x4xf32>
      %30 = arith.subf %26, %29 : vector<1x4xf32>
      %31 = math.exp %30 : vector<1x4xf32>
      %cst_20 = arith.constant dense<0.000000e+00> : vector<1xf32>
      %32 = vector.multi_reduction <add>, %31, %cst_20 [1] : vector<1x4xf32> to vector<1xf32>
      %33 = vector.shape_cast %32 : vector<1xf32> to vector<1x1xf32>
      %34 = vector.broadcast %33 : vector<1x1xf32> to vector<1x4xf32>
      %35 = arith.divf %31, %34 : vector<1x4xf32>
      %c0_21 = arith.constant 0 : index
      %c0_22 = arith.constant 0 : index
      %36 = vector.load %arg5[%c0_21, %c0_22] : memref<1x4xf32, #tpu.memory_space<vmem>>, vector<1x4xf32>
      tpu.vector_store %arg5[%c0_21, %c0_22], %35 {strides = array<i32>} : memref<1x4xf32, #tpu.memory_space<vmem>>, vector<1x4xf32>,
    } else {
    }
    return
  }
  func.func @transform_0(%arg0: i32) -> (i32, i32, i32) {
    %c0_i32 = arith.constant 0 : i32
    %c0_i32_0 = arith.constant 0 : i32
    %c0_i32_1 = arith.constant 0 : i32
    return %c0_i32, %arg0, %c0_i32_0 : i32, i32, i32
  }
  func.func @transform_1(%arg0: i32) -> (i32, i32) {
    %c0_i32 = arith.constant 0 : i32
    %c0_i32_0 = arith.constant 0 : i32
    %c0_i32_1 = arith.constant 0 : i32
    return %c0_i32, %c0_i32_0 : i32, i32
  }
  func.func @transform_2(%arg0: i32) -> (i32, i32) {
    %c0_i32 = arith.constant 0 : i32
    %c0_i32_0 = arith.constant 0 : i32
    %c0_i32_1 = arith.constant 0 : i32
    return %c0_i32, %c0_i32_0 : i32, i32
  }
  func.func @transform_3(%arg0: i32) -> (i32, i32) {
    %c0_i32 = arith.constant 0 : i32
    %c0_i32_0 = arith.constant 0 : i32
    %c0_i32_1 = arith.constant 0 : i32
    return %c0_i32, %c0_i32_0 : i32, i32
  }
  func.func @transform_4(%arg0: i32) -> (i32, i32) {
    %c0_i32 = arith.constant 0 : i32
    %c0_i32_0 = arith.constant 0 : i32
    %c0_i32_1 = arith.constant 0 : i32
    return %c0_i32, %c0_i32_0 : i32, i32
  }
}

</mosaic_0001>

<llo_original>
// kernel: tpu_custom_call.1
$region0: #{tpu_custom_call.1}
  #allocation0 [shape = 'u32[]', space=smem, size = 0x4, offset = 0x4, fixed_abs, tag = 'smem constant byte address 0x4 - core index']
  #allocation1 [shape = 'u32[144,128]{1,0:T(1,128)}', space=vmem, size = 0x12000, scoped, tag = 'internal scratch']
  #allocation8 [shape = 's32[]', space=sflag, size = 0x4, offset = 0, fixed_abs, tag = 'sflag constant byte address 0x0 - dummy sync flag']
  %s0 = inlined_call_operand.hbm [shape: f32[4,256,128], index: 0, kind: input, shape index: {}]
  %s1 = inlined_call_operand.hbm [shape: f32[128,128], index: 1, kind: input, shape index: {}]
  %s2 = inlined_call_operand.vmem [shape: f32[1,128], index: 2, kind: input, shape index: {}]
  %s3 = inlined_call_operand.vmem [shape: f32[1,128], index: 3, kind: input, shape index: {}]
  %s4 = inlined_call_operand.hbm [shape: f32[1,4], index: 4, kind: output, shape index: {}]
  %s5 = sld [smem:[#allocation0]]
  $region65: #{tpu_custom_call.1} parent=0
    _
  %s7 = ssub.s32 1, %s5
  %s8 = scalar_select 0, %s7, %s5
  $region1: #{tpu_custom_call.1} parent=0
    #allocation2 [shape = 'u8[524288]{0}', space=vmem, size = 0x80000, scoped, tag = 'input window, operand 0']
    #allocation3 [shape = 's32[2]{0}', space=sflag, size = 0x8, scoped, tag = 'scoped memory for tpu_custom_call.1']
    #allocation4 [shape = 's32[2]{0}', space=sflag, size = 0x8, scoped, tag = 'scoped memory for tpu_custom_call.1']
    #allocation5 [shape = 'u8[65536]{0}', space=vmem, size = 0x10000, scoped, tag = 'input window, operand 1, single buffered']
    #allocation6 [shape = 's32[1]{0}', space=sflag, size = 0x4, scoped, tag = 'scoped memory for tpu_custom_call.1']
    #allocation7 [shape = 'u8[512]{0}', space=vmem, size = 0x400, scoped, tag = 'output window, operand 0, single buffered']
    %9 = vsyncpa [#allocation3], 0
    %s10 = scalar_lea.sflag [#allocation3], 1
    %11 = vsyncpa %s10, 0
    %12 = vsyncpa [#allocation6], 0
    %13 = vsyncpa [#allocation4], 0
    loop: start=0, step=1, limit=4
    $region2: #{tpu_custom_call.1} parent=1 // loop_pre_header
      _
    $region3: #{tpu_custom_call.1} parent=1 // loop_header
      %s15 = sphi 0, %s19
      %p16 = scmp.ge.s32.totalorder %s15, 4
      %s25 = sphi 0, %s27
      %s28 = sphi 0, %s25
      %s29 = sphi 0, %s28
      %s45 = sphi 0, %s29
      %s49 = sphi 0, %s49
      %s51 = sphi 0, %s49
      %s52 = sphi 0, %s51
      %s66 = sphi 0, %s52
      %s70 = sphi 0, %s70
      %s72 = sphi 0, %s70
      %s73 = sphi 0, %s72
      %s87 = sphi 0, %s73
      %s91 = sphi 0, %s91
      %s93 = sphi 0, %s91
      %s94 = sphi 0, %s93
      %s108 = sphi 0, %s94
      %s112 = sphi 0, %s112
      %s114 = sphi 0, %s112
      %s115 = sphi 0, %s114
      %s129 = sphi 0, %s115
    $region4: #{tpu_custom_call.1} parent=1 // loop_header_branch
      %18 = sbr.rel (%p16) target = $region8
    $region5: #{tpu_custom_call.1} parent=1 // loop_body
      %s20 = ssub.s32 %s15, 1
      %s21 = ssub.s32 %s15, 2
      %s22 = sadd.s32 %s15, 1
      %s23 = ssub.s32 %s15, %s22
      %p24 = scmp.eq.s32.totalorder %s23, 0
      %s26 = sadd.s32 %s25, 1
      %s27 = scalar_select %p24, %s25, %s26
      %p30 = pneg %p24
      %p31 = scmp.eq.s32.totalorder %s15, 1
      %p32 = por %p30, %p31
      %p33 = scmp.ne.s32.totalorder %s25, %s28
      %p34 = scmp.eq.s32.totalorder %s15, 0
      %p35 = por %p33, %p34
      %p36 = scmp.ne.s32.totalorder %s25, %s28
      %p37 = scmp.eq.s32.totalorder %s20, 1
      %p38 = por %p36, %p37
      %p39 = scmp.ne.s32.totalorder %s28, %s29
      %p40 = scmp.eq.s32.totalorder %s20, 0
      %p41 = por %p39, %p40
      %p42 = scmp.ne.s32.totalorder %s28, %s29
      %p43 = scmp.eq.s32.totalorder %s21, 1
      %p44 = por %p42, %p43
      %p46 = scmp.ne.s32.totalorder %s29, %s45
      %p47 = scmp.eq.s32.totalorder %s21, 0
      %p48 = por %p46, %p47
      %s50 = sadd.s32 %s49, 1
      %p53 = scmp.eq.s32.totalorder %s15, 1
      %p54 = scmp.ne.s32.totalorder %s49, %s51
      %p55 = scmp.eq.s32.totalorder %s15, 0
      %p56 = por %p54, %p55
      %p57 = scmp.ne.s32.totalorder %s49, %s51
      %p58 = scmp.eq.s32.totalorder %s20, 1
      %p59 = por %p57, %p58
      %p60 = scmp.ne.s32.totalorder %s51, %s52
      %p61 = scmp.eq.s32.totalorder %s20, 0
      %p62 = por %p60, %p61
      %p63 = scmp.ne.s32.totalorder %s51, %s52
      %p64 = scmp.eq.s32.totalorder %s21, 1
      %p65 = por %p63, %p64
      %p67 = scmp.ne.s32.totalorder %s52, %s66
      %p68 = scmp.eq.s32.totalorder %s21, 0
      %p69 = por %p67, %p68
      %s71 = sadd.s32 %s70, 1
      %p74 = scmp.eq.s32.totalorder %s15, 1
      %p75 = scmp.ne.s32.totalorder %s70, %s72
      %p76 = scmp.eq.s32.totalorder %s15, 0
      %p77 = por %p75, %p76
      %p78 = scmp.ne.s32.totalorder %s70, %s72
      %p79 = scmp.eq.s32.totalorder %s20, 1
      %p80 = por %p78, %p79
      %p81 = scmp.ne.s32.totalorder %s72, %s73
      %p82 = scmp.eq.s32.totalorder %s20, 0
      %p83 = por %p81, %p82
      %p84 = scmp.ne.s32.totalorder %s72, %s73
      %p85 = scmp.eq.s32.totalorder %s21, 1
      %p86 = por %p84, %p85
      %p88 = scmp.ne.s32.totalorder %s73, %s87
      %p89 = scmp.eq.s32.totalorder %s21, 0
      %p90 = por %p88, %p89
      %s92 = sadd.s32 %s91, 1
      %p95 = scmp.eq.s32.totalorder %s15, 1
      %p96 = scmp.ne.s32.totalorder %s91, %s93
      %p97 = scmp.eq.s32.totalorder %s15, 0
      %p98 = por %p96, %p97
      %p99 = scmp.ne.s32.totalorder %s91, %s93
      %p100 = scmp.eq.s32.totalorder %s20, 1
      %p101 = por %p99, %p100
      %p102 = scmp.ne.s32.totalorder %s93, %s94
      %p103 = scmp.eq.s32.totalorder %s20, 0
      %p104 = por %p102, %p103
      %p105 = scmp.ne.s32.totalorder %s93, %s94
      %p106 = scmp.eq.s32.totalorder %s21, 1
      %p107 = por %p105, %p106
      %p109 = scmp.ne.s32.totalorder %s94, %s108
      %p110 = scmp.eq.s32.totalorder %s21, 0
      %p111 = por %p109, %p110
      %s113 = sadd.s32 %s112, 1
      %p116 = scmp.eq.s32.totalorder %s15, 1
      %p117 = scmp.ne.s32.totalorder %s112, %s114
      %p118 = scmp.eq.s32.totalorder %s15, 0
      %p119 = por %p117, %p118
      %p120 = scmp.ne.s32.totalorder %s112, %s114
      %p121 = scmp.eq.s32.totalorder %s20, 1
      %p122 = por %p120, %p121
      %p123 = scmp.ne.s32.totalorder %s114, %s115
      %p124 = scmp.eq.s32.totalorder %s20, 0
      %p125 = por %p123, %p124
      %p126 = scmp.ne.s32.totalorder %s114, %s115
      %p127 = scmp.eq.s32.totalorder %s21, 1
      %p128 = por %p126, %p127
      %p130 = scmp.ne.s32.totalorder %s115, %s129
      %p131 = scmp.eq.s32.totalorder %s21, 0
      %p132 = por %p130, %p131
      %p133 = scmp.le.s32.totalorder 1, %s15
      %p134 = scmp.lt.s32.totalorder %s15, 3
      %p135 = pnand %p133, %p134
      %p136 = pneg %p135
      // Predicated region
      $region9: #{tpu_custom_call.1} parent=5 // pred_check
        _
      $region10: #{tpu_custom_call.1} parent=5 // pred_check_branch
        %138 = sbr.rel (%p135) target = $region12
      $region11: #{tpu_custom_call.1} parent=5 // pred_region
        %s139 = ssub.s32 %s15, 1
        // Predicated region
        $region13: #{tpu_custom_call.1} parent=11 // pred_check
          %p140 = pneg %p62
        $region14: #{tpu_custom_call.1} parent=11 // pred_check_branch
          %142 = sbr.rel (%p140) target = $region16
        $region15: #{tpu_custom_call.1} parent=11 // pred_region
          %s144 = ssub.s32 2048, 2048
          %145 = vsyncadd [#allocation6], %s144
          %s146 = sshll.u32 [#allocation5], 4
          %s147 = int_to_ptr.vmem [resolvable:$true] %s146
          %152 = dma.hbm_to_vmem [thread:$0]  %s1, 2048, %s147, [#allocation6], 128, 128, 8
        $region16: #{tpu_custom_call.1} parent=11 // pred_fallthru
          _
        // Predicated region
        $region17: #{tpu_custom_call.1} parent=11 // pred_check
          %p153 = pneg %p83
        $region18: #{tpu_custom_call.1} parent=11 // pred_check_branch
          %155 = sbr.rel (%p153) target = $region20
        $region19: #{tpu_custom_call.1} parent=11 // pred_region
          _
        $region20: #{tpu_custom_call.1} parent=11 // pred_fallthru
          _
        // Predicated region
        $region21: #{tpu_custom_call.1} parent=11 // pred_check
          %p156 = pneg %p104
        $region22: #{tpu_custom_call.1} parent=11 // pred_check_branch
          %158 = sbr.rel (%p156) target = $region24
        $region23: #{tpu_custom_call.1} parent=11 // pred_region
          _
        $region24: #{tpu_custom_call.1} parent=11 // pred_fallthru
          _
      $region12: #{tpu_custom_call.1} parent=5 // pred_fallthru
        _
      %p159 = scmp.lt.s32.totalorder %s15, 2
      // Predicated region
      $region25: #{tpu_custom_call.1} parent=5 // pred_check
        %p160 = pneg %p159
      $region26: #{tpu_custom_call.1} parent=5 // pred_check_branch
        %162 = sbr.rel (%p160) target = $region28
      $region27: #{tpu_custom_call.1} parent=5 // pred_region
        // Predicated region
        $region29: #{tpu_custom_call.1} parent=27 // pred_check
          %p163 = pneg %p35
        $region30: #{tpu_custom_call.1} parent=27 // pred_check_branch
          %165 = sbr.rel (%p163) target = $region32
        $region31: #{tpu_custom_call.1} parent=27 // pred_region
          #allocation9 [shape = 'u32[6]{0}', space=smem, size = 0x18, scoped, tag = 'DMA stride descriptor']
          %s166 = sand.u32 %s25, 1
          %s167 = scalar_lea.sflag [#allocation3], %s166
          %s168 = sand.u32 %s25, 1
          %s169 = smul.addr %s168, 512
          %s170 = scalar_lea.vmem [#allocation2], %s169
          %s171 = smul.u32 16, %s15
          %s173 = ssub.s32 8192, 8192
          %174 = vsyncadd %s167, %s173
          %s175 = smul.addr %s171, 128
          %s176 = scalar_lea.hbm %s0, %s175
          %s178 = sshll.u32 1, 14
          %s179 = sxor.u32 4294967295, %s178
          %s181 = sld [smem:[#allocation0]]
          %s182 = sadd.s32 2, %s181
          %s184 = sshll.u32 7, 26
          %s185 = sxor.u32 4294967295, %s184
          %s186 = sand.u32 0, %s185
          %s187 = sshll.u32 %s182, 26
          %s188 = sor.u32 %s186, %s187
          %s189 = sshll.u32 %s170, 4
          %s190 = int_to_ptr.vmem [resolvable:$true] %s189
          %196 = sst [smem:[#allocation9]] 4096
          %s197 = scalar_lea.smem [#allocation9], 1
          %198 = sst [smem:[%s197]] 2048
          %s199 = scalar_lea.smem [#allocation9], 2
          %200 = sst [smem:[%s199]] 16
          %s201 = scalar_lea.smem [#allocation9], 3
          %202 = sst [smem:[%s201]] 128
          %s203 = scalar_lea.smem [#allocation9], 4
          %204 = sst [smem:[%s203]] 128
          %s205 = scalar_lea.smem [#allocation9], 5
          %206 = sst [smem:[%s205]] 8
          %208 = dma.general %s176, 8192, %s190, %s167, 131072, [#allocation9], %s188, 0
        $region32: #{tpu_custom_call.1} parent=27 // pred_fallthru
          _
      $region28: #{tpu_custom_call.1} parent=5 // pred_fallthru
        _
      %p209 = scmp.le.s32.totalorder 1, %s15
      %p210 = scmp.lt.s32.totalorder %s15, 3
      %p211 = pnand %p209, %p210
      %p212 = pneg %p211
      // Predicated region
      $region33: #{tpu_custom_call.1} parent=5 // pred_check
        _
      $region34: #{tpu_custom_call.1} parent=5 // pred_check_branch
        %214 = sbr.rel (%p211) target = $region36
      $region35: #{tpu_custom_call.1} parent=5 // pred_region
        %s215 = ssub.s32 %s15, 1
        %s216 = sand.u32 %s28, 1
        %s217 = scalar_lea.sflag [#allocation3], %s216
        %s218 = sand.u32 %s28, 1
        %s219 = smul.addr %s218, 512
        %s220 = scalar_lea.vmem [#allocation2], %s219
        // Predicated region
        $region37: #{tpu_custom_call.1} parent=35 // pred_check
          %p221 = pneg %p41
        $region38: #{tpu_custom_call.1} parent=35 // pred_check_branch
          %223 = sbr.rel (%p221) target = $region40
        $region39: #{tpu_custom_call.1} parent=35 // pred_region
          %224 = dma.done %s217, 8192
        $region40: #{tpu_custom_call.1} parent=35 // pred_fallthru
          _
        // Predicated region
        $region41: #{tpu_custom_call.1} parent=35 // pred_check
          %p225 = pneg %p62
        $region42: #{tpu_custom_call.1} parent=35 // pred_check_branch
          %227 = sbr.rel (%p225) target = $region44
        $region43: #{tpu_custom_call.1} parent=35 // pred_region
          %228 = dma.done [#allocation6], 2048
        $region44: #{tpu_custom_call.1} parent=35 // pred_fallthru
          _
        %s229 = sand.u32 %s28, 1
        %s230 = scalar_lea.sflag [#allocation3], %s229
        %s231 = sand.u32 %s28, 1
        %s232 = smul.addr %s231, 512
        %s233 = scalar_lea.vmem [#allocation2], %s232
        %p234 = pneg %p41
        %p235 = pneg %p38
        %p236 = pneg %p62
        %p237 = pneg %p59
        %p238 = pneg %p83
        %p239 = pneg %p80
        %p240 = pneg %p104
        %p241 = pneg %p101
        %p242 = pneg %p125
        %p243 = pneg %p122
        %s244 = smul.u32 16, %s20
        %p245 = scmp.eq.s32.totalorder %s20, 0
        // Predicated region
        $region45: #{tpu_custom_call.1} parent=35 // pred_check
          %p246 = pneg %p245
        $region46: #{tpu_custom_call.1} parent=35 // pred_check_branch
          %248 = sbr.rel (%p246) target = $region48
        $region47: #{tpu_custom_call.1} parent=35 // pred_region
          %vm249 = vcmask 24576
          %250 = vst.msk [vmem:[#allocation7] sm:$0x1] %vm249, 0.0
        $region48: #{tpu_custom_call.1} parent=35 // pred_fallthru
          _
        %v251 = vld [vmem:[%s220] sm:$0xff]
        %v252 = vld [vmem:[%s220 + $0x8] sm:$0xff]
        %v253 = vld [vmem:[%s220 + $0x10] sm:$0xff]
        %v254 = vld [vmem:[%s220 + $0x18] sm:$0xff]
        %v255 = vld [vmem:[%s220 + $0x20] sm:$0xff]
        %v256 = vld [vmem:[%s220 + $0x28] sm:$0xff]
        %v257 = vld [vmem:[%s220 + $0x30] sm:$0xff]
        %v258 = vld [vmem:[%s220 + $0x38] sm:$0xff]
        %v259 = vld [vmem:[%s220 + $0x40] sm:$0xff]
        %v260 = vld [vmem:[%s220 + $0x48] sm:$0xff]
        %v261 = vld [vmem:[%s220 + $0x50] sm:$0xff]
        %v262 = vld [vmem:[%s220 + $0x58] sm:$0xff]
        %v263 = vld [vmem:[%s220 + $0x60] sm:$0xff]
        %v264 = vld [vmem:[%s220 + $0x68] sm:$0xff]
        %v265 = vld [vmem:[%s220 + $0x70] sm:$0xff]
        %v266 = vld [vmem:[%s220 + $0x78] sm:$0xff]
        %v267 = vld [vmem:[%s220 + $0x80] sm:$0xff]
        %v268 = vld [vmem:[%s220 + $0x88] sm:$0xff]
        %v269 = vld [vmem:[%s220 + $0x90] sm:$0xff]
        %v270 = vld [vmem:[%s220 + $0x98] sm:$0xff]
        %v271 = vld [vmem:[%s220 + $0xa0] sm:$0xff]
        %v272 = vld [vmem:[%s220 + $0xa8] sm:$0xff]
        %v273 = vld [vmem:[%s220 + $0xb0] sm:$0xff]
        %v274 = vld [vmem:[%s220 + $0xb8] sm:$0xff]
        %v275 = vld [vmem:[%s220 + $0xc0] sm:$0xff]
        %v276 = vld [vmem:[%s220 + $0xc8] sm:$0xff]
        %v277 = vld [vmem:[%s220 + $0xd0] sm:$0xff]
        %v278 = vld [vmem:[%s220 + $0xd8] sm:$0xff]
        %v279 = vld [vmem:[%s220 + $0xe0] sm:$0xff]
        %v280 = vld [vmem:[%s220 + $0xe8] sm:$0xff]
        %v281 = vld [vmem:[%s220 + $0xf0] sm:$0xff]
        %v282 = vld [vmem:[%s220 + $0xf8] sm:$0xff]
        %v283 = vld [vmem:[%s220 + $0x100] sm:$0xff]
        %v284 = vld [vmem:[%s220 + $0x108] sm:$0xff]
        %v285 = vld [vmem:[%s220 + $0x110] sm:$0xff]
        %v286 = vld [vmem:[%s220 + $0x118] sm:$0xff]
        %v287 = vld [vmem:[%s220 + $0x120] sm:$0xff]
        %v288 = vld [vmem:[%s220 + $0x128] sm:$0xff]
        %v289 = vld [vmem:[%s220 + $0x130] sm:$0xff]
        %v290 = vld [vmem:[%s220 + $0x138] sm:$0xff]
        %v291 = vld [vmem:[%s220 + $0x140] sm:$0xff]
        %v292 = vld [vmem:[%s220 + $0x148] sm:$0xff]
        %v293 = vld [vmem:[%s220 + $0x150] sm:$0xff]
        %v294 = vld [vmem:[%s220 + $0x158] sm:$0xff]
        %v295 = vld [vmem:[%s220 + $0x160] sm:$0xff]
        %v296 = vld [vmem:[%s220 + $0x168] sm:$0xff]
        %v297 = vld [vmem:[%s220 + $0x170] sm:$0xff]
        %v298 = vld [vmem:[%s220 + $0x178] sm:$0xff]
        %v299 = vld [vmem:[%s220 + $0x180] sm:$0xff]
        %v300 = vld [vmem:[%s220 + $0x188] sm:$0xff]
        %v301 = vld [vmem:[%s220 + $0x190] sm:$0xff]
        %v302 = vld [vmem:[%s220 + $0x198] sm:$0xff]
        %v303 = vld [vmem:[%s220 + $0x1a0] sm:$0xff]
        %v304 = vld [vmem:[%s220 + $0x1a8] sm:$0xff]
        %v305 = vld [vmem:[%s220 + $0x1b0] sm:$0xff]
        %v306 = vld [vmem:[%s220 + $0x1b8] sm:$0xff]
        %v307 = vld [vmem:[%s220 + $0x1c0] sm:$0xff]
        %v308 = vld [vmem:[%s220 + $0x1c8] sm:$0xff]
        %v309 = vld [vmem:[%s220 + $0x1d0] sm:$0xff]
        %v310 = vld [vmem:[%s220 + $0x1d8] sm:$0xff]
        %v311 = vld [vmem:[%s220 + $0x1e0] sm:$0xff]
        %v312 = vld [vmem:[%s220 + $0x1e8] sm:$0xff]
        %v313 = vld [vmem:[%s220 + $0x1f0] sm:$0xff]
        %v314 = vld [vmem:[%s220 + $0x1f8] sm:$0xff]
        %v315 = vld [vmem:[#allocation5] sm:$0xff]
        %v316 = vld [vmem:[#allocation5 + $0x8] sm:$0xff]
        %v317 = vld [vmem:[#allocation5 + $0x10] sm:$0xff]
        %v318 = vld [vmem:[#allocation5 + $0x18] sm:$0xff]
        %v319 = vld [vmem:[#allocation5 + $0x20] sm:$0xff]
        %v320 = vld [vmem:[#allocation5 + $0x28] sm:$0xff]
        %v321 = vld [vmem:[#allocation5 + $0x30] sm:$0xff]
        %v322 = vld [vmem:[#allocation5 + $0x38] sm:$0xff]
        %v323 = vld [vmem:[#allocation5 + $0x40] sm:$0xff]
        %v324 = vld [vmem:[#allocation5 + $0x48] sm:$0xff]
        %v325 = vld [vmem:[#allocation5 + $0x50] sm:$0xff]
        %v326 = vld [vmem:[#allocation5 + $0x58] sm:$0xff]
        %v327 = vld [vmem:[#allocation5 + $0x60] sm:$0xff]
        %v328 = vld [vmem:[#allocation5 + $0x68] sm:$0xff]
        %v329 = vld [vmem:[#allocation5 + $0x70] sm:$0xff]
        %v330 = vld [vmem:[#allocation5 + $0x78] sm:$0xff]
        %v331 = vld [vmem:[%s2] sm:$0x1]
        %v333 = vlaneseq
        %v334 = vshrl.u32 %v333, 7
        %v335 = vsub.s32 0, %v334
        %v336 = vrot.slane %v331, %v335
        %338 = vmatprep.subr.mxu0 0.0
        %339 = vmatpush1.msra.mxu0 %v330
        %340 = vmatprep.subr.mxu0 0.0
        %341 = vmatpush1.msra.mxu0 %v329
        %342 = vmatprep.subr.mxu0 0.0
        %343 = vmatpush1.msra.mxu0 %v328
        %344 = vmatprep.subr.mxu0 0.0
        %345 = vmatpush1.msra.mxu0 %v327
        %346 = vmatprep.subr.mxu0 0.0
        %347 = vmatpush1.msra.mxu0 %v326
        %348 = vmatprep.subr.mxu0 0.0
        %349 = vmatpush1.msra.mxu0 %v325
        %350 = vmatprep.subr.mxu0 0.0
        %351 = vmatpush1.msra.mxu0 %v324
        %352 = vmatprep.subr.mxu0 0.0
        %353 = vmatpush1.msra.mxu0 %v323
        %354 = vmatprep.subr.mxu0 0.0
        %355 = vmatpush1.msra.mxu0 %v322
        %356 = vmatprep.subr.mxu0 0.0
        %357 = vmatpush1.msra.mxu0 %v321
        %358 = vmatprep.subr.mxu0 0.0
        %359 = vmatpush1.msra.mxu0 %v320
        %360 = vmatprep.subr.mxu0 0.0
        %361 = vmatpush1.msra.mxu0 %v319
        %362 = vmatprep.subr.mxu0 0.0
        %363 = vmatpush1.msra.mxu0 %v318
        %364 = vmatprep.subr.mxu0 0.0
        %365 = vmatpush1.msra.mxu0 %v317
        %366 = vmatprep.subr.mxu0 0.0
        %367 = vmatpush1.msra.mxu0 %v316
        %368 = vmatprep.subr.mxu0 0.0
        %369 = vmatpush1.msra.mxu0 %v315
        %370 = vmatprep.subr.mxu0 0.0
        %371 = vmatpush2.msra.mxu0 0.0
        %372 = vmatprep.subr.mxu0 0.0
        %373 = vmatpush2.msra.mxu0 0.0
        %374 = vmatprep.subr.mxu0 0.0
        %375 = vmatpush2.msra.mxu0 0.0
        %376 = vmatprep.subr.mxu0 0.0
        %377 = vmatpush2.msra.mxu0 0.0
        %378 = vmatprep.subr.mxu0 0.0
        %379 = vmatpush2.msra.mxu0 0.0
        %380 = vmatprep.subr.mxu0 0.0
        %381 = vmatpush2.msra.mxu0 0.0
        %382 = vmatprep.subr.mxu0 0.0
        %383 = vmatpush2.msra.mxu0 0.0
        %384 = vmatprep.subr.mxu0 0.0
        %385 = vmatpush2.msra.mxu0 0.0
        %386 = vmatprep.subr.mxu0 0.0
        %387 = vmatpush2.msra.mxu0 0.0
        %388 = vmatprep.subr.mxu0 0.0
        %389 = vmatpush2.msra.mxu0 0.0
        %390 = vmatprep.subr.mxu0 0.0
        %391 = vmatpush2.msra.mxu0 0.0
        %392 = vmatprep.subr.mxu0 0.0
        %393 = vmatpush2.msra.mxu0 0.0
        %394 = vmatprep.subr.mxu0 0.0
        %395 = vmatpush2.msra.mxu0 0.0
        %396 = vmatprep.subr.mxu0 0.0
        %397 = vmatpush2.msra.mxu0 0.0
        %398 = vmatprep.subr.mxu0 0.0
        %399 = vmatpush2.msra.mxu0 0.0
        %400 = vmatprep.subr.mxu0 0.0
        %401 = vmatpush2.msra.mxu0 0.0
        %402 = vmatprep.mubr.f32.mxu0 0.0
        %403 = vmatmul.mubr.f32.gmra.mxu0 %v251
        %v404 = vpop.f32.mrf.mxu0
        %v405 = vadd.f32 %v336, %v404
        %v406 = vpop.f32.mrf.mxu0
        %407 = vmatprep.mubr.f32.mxu0 0.0
        %408 = vmatmul.mubr.f32.gmra.mxu0 %v252
        %v409 = vpop.f32.mrf.mxu0
        %v410 = vadd.f32 %v336, %v409
        %v411 = vpop.f32.mrf.mxu0
        %412 = vmatprep.mubr.f32.mxu0 0.0
        %413 = vmatmul.mubr.f32.gmra.mxu0 %v253
        %v414 = vpop.f32.mrf.mxu0
        %v415 = vadd.f32 %v336, %v414
        %v416 = vpop.f32.mrf.mxu0
        %417 = vmatprep.mubr.f32.mxu0 0.0
        %418 = vmatmul.mubr.f32.gmra.mxu0 %v254
        %v419 = vpop.f32.mrf.mxu0
        %v420 = vadd.f32 %v336, %v419
        %v421 = vpop.f32.mrf.mxu0
        %422 = vmatprep.mubr.f32.mxu0 0.0
        %423 = vmatmul.mubr.f32.gmra.mxu0 %v255
        %v424 = vpop.f32.mrf.mxu0
        %v425 = vadd.f32 %v336, %v424
        %v426 = vpop.f32.mrf.mxu0
        %427 = vmatprep.mubr.f32.mxu0 0.0
        %428 = vmatmul.mubr.f32.gmra.mxu0 %v256
        %v429 = vpop.f32.mrf.mxu0
        %v430 = vadd.f32 %v336, %v429
        %v431 = vpop.f32.mrf.mxu0
        %432 = vmatprep.mubr.f32.mxu0 0.0
        %433 = vmatmul.mubr.f32.gmra.mxu0 %v257
        %v434 = vpop.f32.mrf.mxu0
        %v435 = vadd.f32 %v336, %v434
        %v436 = vpop.f32.mrf.mxu0
        %437 = vmatprep.mubr.f32.mxu0 0.0
        %438 = vmatmul.mubr.f32.gmra.mxu0 %v258
        %v439 = vpop.f32.mrf.mxu0
        %v440 = vadd.f32 %v336, %v439
        %v441 = vpop.f32.mrf.mxu0
        %442 = vmatprep.mubr.f32.mxu0 0.0
        %443 = vmatmul.mubr.f32.gmra.mxu0 %v259
        %v444 = vpop.f32.mrf.mxu0
        %v445 = vadd.f32 %v336, %v444
        %v446 = vpop.f32.mrf.mxu0
        %447 = vmatprep.mubr.f32.mxu0 0.0
        %448 = vmatmul.mubr.f32.gmra.mxu0 %v260
        %v449 = vpop.f32.mrf.mxu0
        %v450 = vadd.f32 %v336, %v449
        %v451 = vpop.f32.mrf.mxu0
        %452 = vmatprep.mubr.f32.mxu0 0.0
        %453 = vmatmul.mubr.f32.gmra.mxu0 %v261
        %v454 = vpop.f32.mrf.mxu0
        %v455 = vadd.f32 %v336, %v454
        %v456 = vpop.f32.mrf.mxu0
        %457 = vmatprep.mubr.f32.mxu0 0.0
        %458 = vmatmul.mubr.f32.gmra.mxu0 %v262
        %v459 = vpop.f32.mrf.mxu0
        %v460 = vadd.f32 %v336, %v459
        %v461 = vpop.f32.mrf.mxu0
        %462 = vmatprep.mubr.f32.mxu0 0.0
        %463 = vmatmul.mubr.f32.gmra.mxu0 %v263
        %v464 = vpop.f32.mrf.mxu0
        %v465 = vadd.f32 %v336, %v464
        %v466 = vpop.f32.mrf.mxu0
        %467 = vmatprep.mubr.f32.mxu0 0.0
        %468 = vmatmul.mubr.f32.gmra.mxu0 %v264
        %v469 = vpop.f32.mrf.mxu0
        %v470 = vadd.f32 %v336, %v469
        %v471 = vpop.f32.mrf.mxu0
        %472 = vmatprep.mubr.f32.mxu0 0.0
        %473 = vmatmul.mubr.f32.gmra.mxu0 %v265
        %v474 = vpop.f32.mrf.mxu0
        %v475 = vadd.f32 %v336, %v474
        %v476 = vpop.f32.mrf.mxu0
        %477 = vmatprep.mubr.f32.mxu0 0.0
        %478 = vmatmul.mubr.f32.gmra.mxu0 %v266
        %v479 = vpop.f32.mrf.mxu0
        %v480 = vadd.f32 %v336, %v479
        %v481 = vpop.f32.mrf.mxu0
        %482 = vmatprep.mubr.f32.mxu0 0.0
        %483 = vmatmul.mubr.f32.gmra.mxu0 %v267
        %v484 = vpop.f32.mrf.mxu0
        %v485 = vadd.f32 %v336, %v484
        %v486 = vpop.f32.mrf.mxu0
        %487 = vmatprep.mubr.f32.mxu0 0.0
        %488 = vmatmul.mubr.f32.gmra.mxu0 %v268
        %v489 = vpop.f32.mrf.mxu0
        %v490 = vadd.f32 %v336, %v489
        %v491 = vpop.f32.mrf.mxu0
        %492 = vmatprep.mubr.f32.mxu0 0.0
        %493 = vmatmul.mubr.f32.gmra.mxu0 %v269
        %v494 = vpop.f32.mrf.mxu0
        %v495 = vadd.f32 %v336, %v494
        %v496 = vpop.f32.mrf.mxu0
        %497 = vmatprep.mubr.f32.mxu0 0.0
        %498 = vmatmul.mubr.f32.gmra.mxu0 %v270
        %v499 = vpop.f32.mrf.mxu0
        %v500 = vadd.f32 %v336, %v499
        %v501 = vpop.f32.mrf.mxu0
        %502 = vmatprep.mubr.f32.mxu0 0.0
        %503 = vmatmul.mubr.f32.gmra.mxu0 %v271
        %v504 = vpop.f32.mrf.mxu0
        %v505 = vadd.f32 %v336, %v504
        %v506 = vpop.f32.mrf.mxu0
        %507 = vmatprep.mubr.f32.mxu0 0.0
        %508 = vmatmul.mubr.f32.gmra.mxu0 %v272
        %v509 = vpop.f32.mrf.mxu0
        %v510 = vadd.f32 %v336, %v509
        %v511 = vpop.f32.mrf.mxu0
        %512 = vmatprep.mubr.f32.mxu0 0.0
        %513 = vmatmul.mubr.f32.gmra.mxu0 %v273
        %v514 = vpop.f32.mrf.mxu0
        %v515 = vadd.f32 %v336, %v514
        %v516 = vpop.f32.mrf.mxu0
        %517 = vmatprep.mubr.f32.mxu0 0.0
        %518 = vmatmul.mubr.f32.gmra.mxu0 %v274
        %v519 = vpop.f32.mrf.mxu0
        %v520 = vadd.f32 %v336, %v519
        %v521 = vpop.f32.mrf.mxu0
        %522 = vmatprep.mubr.f32.mxu0 0.0
        %523 = vmatmul.mubr.f32.gmra.mxu0 %v275
        %v524 = vpop.f32.mrf.mxu0
        %v525 = vadd.f32 %v336, %v524
        %v526 = vpop.f32.mrf.mxu0
        %527 = vmatprep.mubr.f32.mxu0 0.0
        %528 = vmatmul.mubr.f32.gmra.mxu0 %v276
        %v529 = vpop.f32.mrf.mxu0
        %v530 = vadd.f32 %v336, %v529
        %v531 = vpop.f32.mrf.mxu0
        %532 = vmatprep.mubr.f32.mxu0 0.0
        %533 = vmatmul.mubr.f32.gmra.mxu0 %v277
        %v534 = vpop.f32.mrf.mxu0
        %v535 = vadd.f32 %v336, %v534
        %v536 = vpop.f32.mrf.mxu0
        %537 = vmatprep.mubr.f32.mxu0 0.0
        %538 = vmatmul.mubr.f32.gmra.mxu0 %v278
        %v539 = vpop.f32.mrf.mxu0
        %v540 = vadd.f32 %v336, %v539
        %v541 = vpop.f32.mrf.mxu0
        %542 = vmatprep.mubr.f32.mxu0 0.0
        %543 = vmatmul.mubr.f32.gmra.mxu0 %v279
        %v544 = vpop.f32.mrf.mxu0
        %v545 = vadd.f32 %v336, %v544
        %v546 = vpop.f32.mrf.mxu0
        %547 = vmatprep.mubr.f32.mxu0 0.0
        %548 = vmatmul.mubr.f32.gmra.mxu0 %v280
        %v549 = vpop.f32.mrf.mxu0
        %v550 = vadd.f32 %v336, %v549
        %v551 = vpop.f32.mrf.mxu0
        %552 = vmatprep.mubr.f32.mxu0 0.0
        %553 = vmatmul.mubr.f32.gmra.mxu0 %v281
        %v554 = vpop.f32.mrf.mxu0
        %v555 = vadd.f32 %v336, %v554
        %v556 = vpop.f32.mrf.mxu0
        %557 = vmatprep.mubr.f32.mxu0 0.0
        %558 = vmatmul.mubr.f32.gmra.mxu0 %v282
        %v559 = vpop.f32.mrf.mxu0
        %v560 = vadd.f32 %v336, %v559
        %v561 = vpop.f32.mrf.mxu0
        %562 = vmatprep.mubr.f32.mxu0 0.0
        %563 = vmatmul.mubr.f32.gmra.mxu0 %v283
        %v564 = vpop.f32.mrf.mxu0
        %v565 = vadd.f32 %v336, %v564
        %v566 = vpop.f32.mrf.mxu0
        %567 = vmatprep.mubr.f32.mxu0 0.0
        %568 = vmatmul.mubr.f32.gmra.mxu0 %v284
        %v569 = vpop.f32.mrf.mxu0
        %v570 = vadd.f32 %v336, %v569
        %v571 = vpop.f32.mrf.mxu0
        %572 = vmatprep.mubr.f32.mxu0 0.0
        %573 = vmatmul.mubr.f32.gmra.mxu0 %v285
        %v574 = vpop.f32.mrf.mxu0
        %v575 = vadd.f32 %v336, %v574
        %v576 = vpop.f32.mrf.mxu0
        %577 = vmatprep.mubr.f32.mxu0 0.0
        %578 = vmatmul.mubr.f32.gmra.mxu0 %v286
        %v579 = vpop.f32.mrf.mxu0
        %v580 = vadd.f32 %v336, %v579
        %v581 = vpop.f32.mrf.mxu0
        %582 = vmatprep.mubr.f32.mxu0 0.0
        %583 = vmatmul.mubr.f32.gmra.mxu0 %v287
        %v584 = vpop.f32.mrf.mxu0
        %v585 = vadd.f32 %v336, %v584
        %v586 = vpop.f32.mrf.mxu0
        %587 = vmatprep.mubr.f32.mxu0 0.0
        %588 = vmatmul.mubr.f32.gmra.mxu0 %v288
        %v589 = vpop.f32.mrf.mxu0
        %v590 = vadd.f32 %v336, %v589
        %v591 = vpop.f32.mrf.mxu0
        %592 = vmatprep.mubr.f32.mxu0 0.0
        %593 = vmatmul.mubr.f32.gmra.mxu0 %v289
        %v594 = vpop.f32.mrf.mxu0
        %v595 = vadd.f32 %v336, %v594
        %v596 = vpop.f32.mrf.mxu0
        %597 = vmatprep.mubr.f32.mxu0 0.0
        %598 = vmatmul.mubr.f32.gmra.mxu0 %v290
        %v599 = vpop.f32.mrf.mxu0
        %v600 = vadd.f32 %v336, %v599
        %v601 = vpop.f32.mrf.mxu0
        %602 = vmatprep.mubr.f32.mxu0 0.0
        %603 = vmatmul.mubr.f32.gmra.mxu0 %v291
        %v604 = vpop.f32.mrf.mxu0
        %v605 = vadd.f32 %v336, %v604
        %v606 = vpop.f32.mrf.mxu0
        %607 = vmatprep.mubr.f32.mxu0 0.0
        %608 = vmatmul.mubr.f32.gmra.mxu0 %v292
        %v609 = vpop.f32.mrf.mxu0
        %v610 = vadd.f32 %v336, %v609
        %v611 = vpop.f32.mrf.mxu0
        %612 = vmatprep.mubr.f32.mxu0 0.0
        %613 = vmatmul.mubr.f32.gmra.mxu0 %v293
        %v614 = vpop.f32.mrf.mxu0
        %v615 = vadd.f32 %v336, %v614
        %v616 = vpop.f32.mrf.mxu0
        %617 = vmatprep.mubr.f32.mxu0 0.0
        %618 = vmatmul.mubr.f32.gmra.mxu0 %v294
        %v619 = vpop.f32.mrf.mxu0
        %v620 = vadd.f32 %v336, %v619
        %v621 = vpop.f32.mrf.mxu0
        %622 = vmatprep.mubr.f32.mxu0 0.0
        %623 = vmatmul.mubr.f32.gmra.mxu0 %v295
        %v624 = vpop.f32.mrf.mxu0
        %v625 = vadd.f32 %v336, %v624
        %v626 = vpop.f32.mrf.mxu0
        %627 = vmatprep.mubr.f32.mxu0 0.0
        %628 = vmatmul.mubr.f32.gmra.mxu0 %v296
        %v629 = vpop.f32.mrf.mxu0
        %v630 = vadd.f32 %v336, %v629
        %v631 = vpop.f32.mrf.mxu0
        %632 = vmatprep.mubr.f32.mxu0 0.0
        %633 = vmatmul.mubr.f32.gmra.mxu0 %v297
        %v634 = vpop.f32.mrf.mxu0
        %v635 = vadd.f32 %v336, %v634
        %v636 = vpop.f32.mrf.mxu0
        %637 = vmatprep.mubr.f32.mxu0 0.0
        %638 = vmatmul.mubr.f32.gmra.mxu0 %v298
        %v639 = vpop.f32.mrf.mxu0
        %v640 = vadd.f32 %v336, %v639
        %v641 = vpop.f32.mrf.mxu0
        %642 = vmatprep.mubr.f32.mxu0 0.0
        %643 = vmatmul.mubr.f32.gmra.mxu0 %v299
        %v644 = vpop.f32.mrf.mxu0
        %v645 = vadd.f32 %v336, %v644
        %v646 = vpop.f32.mrf.mxu0
        %647 = vmatprep.mubr.f32.mxu0 0.0
        %648 = vmatmul.mubr.f32.gmra.mxu0 %v300
        %v649 = vpop.f32.mrf.mxu0
        %v650 = vadd.f32 %v336, %v649
        %v651 = vpop.f32.mrf.mxu0
        %652 = vmatprep.mubr.f32.mxu0 0.0
        %653 = vmatmul.mubr.f32.gmra.mxu0 %v301
        %v654 = vpop.f32.mrf.mxu0
        %v655 = vadd.f32 %v336, %v654
        %v656 = vpop.f32.mrf.mxu0
        %657 = vmatprep.mubr.f32.mxu0 0.0
        %658 = vmatmul.mubr.f32.gmra.mxu0 %v302
        %v659 = vpop.f32.mrf.mxu0
        %v660 = vadd.f32 %v336, %v659
        %v661 = vpop.f32.mrf.mxu0
        %662 = vmatprep.mubr.f32.mxu0 0.0
        %663 = vmatmul.mubr.f32.gmra.mxu0 %v303
        %v664 = vpop.f32.mrf.mxu0
        %v665 = vadd.f32 %v336, %v664
        %v666 = vpop.f32.mrf.mxu0
        %667 = vmatprep.mubr.f32.mxu0 0.0
        %668 = vmatmul.mubr.f32.gmra.mxu0 %v304
        %v669 = vpop.f32.mrf.mxu0
        %v670 = vadd.f32 %v336, %v669
        %v671 = vpop.f32.mrf.mxu0
        %672 = vmatprep.mubr.f32.mxu0 0.0
        %673 = vmatmul.mubr.f32.gmra.mxu0 %v305
        %v674 = vpop.f32.mrf.mxu0
        %v675 = vadd.f32 %v336, %v674
        %v676 = vpop.f32.mrf.mxu0
        %677 = vmatprep.mubr.f32.mxu0 0.0
        %678 = vmatmul.mubr.f32.gmra.mxu0 %v306
        %v679 = vpop.f32.mrf.mxu0
        %v680 = vadd.f32 %v336, %v679
        %v681 = vpop.f32.mrf.mxu0
        %682 = vmatprep.mubr.f32.mxu0 0.0
        %683 = vmatmul.mubr.f32.gmra.mxu0 %v307
        %v684 = vpop.f32.mrf.mxu0
        %v685 = vadd.f32 %v336, %v684
        %v686 = vpop.f32.mrf.mxu0
        %687 = vmatprep.mubr.f32.mxu0 0.0
        %688 = vmatmul.mubr.f32.gmra.mxu0 %v308
        %v689 = vpop.f32.mrf.mxu0
        %v690 = vadd.f32 %v336, %v689
        %v691 = vpop.f32.mrf.mxu0
        %692 = vmatprep.mubr.f32.mxu0 0.0
        %693 = vmatmul.mubr.f32.gmra.mxu0 %v309
        %v694 = vpop.f32.mrf.mxu0
        %v695 = vadd.f32 %v336, %v694
        %v696 = vpop.f32.mrf.mxu0
        %697 = vmatprep.mubr.f32.mxu0 0.0
        %698 = vmatmul.mubr.f32.gmra.mxu0 %v310
        %v699 = vpop.f32.mrf.mxu0
        %v700 = vadd.f32 %v336, %v699
        %v701 = vpop.f32.mrf.mxu0
        %702 = vmatprep.mubr.f32.mxu0 0.0
        %703 = vmatmul.mubr.f32.gmra.mxu0 %v311
        %v704 = vpop.f32.mrf.mxu0
        %v705 = vadd.f32 %v336, %v704
        %v706 = vpop.f32.mrf.mxu0
        %707 = vmatprep.mubr.f32.mxu0 0.0
        %708 = vmatmul.mubr.f32.gmra.mxu0 %v312
        %v709 = vpop.f32.mrf.mxu0
        %v710 = vadd.f32 %v336, %v709
        %v711 = vpop.f32.mrf.mxu0
        %712 = vmatprep.mubr.f32.mxu0 0.0
        %713 = vmatmul.mubr.f32.gmra.mxu0 %v313
        %v714 = vpop.f32.mrf.mxu0
        %v715 = vadd.f32 %v336, %v714
        %v716 = vpop.f32.mrf.mxu0
        %717 = vmatprep.mubr.f32.mxu0 0.0
        %718 = vmatmul.mubr.f32.gmra.mxu0 %v314
        %v719 = vpop.f32.mrf.mxu0
        %v720 = vadd.f32 %v336, %v719
        %v721 = vpop.f32.mrf.mxu0
        %722 = vdwg.mxu0
        %v723 = vtanh.pop %v405
        %v724 = vtanh.pop %v410
        %v725 = vtanh.pop %v415
        %v726 = vtanh.pop %v420
        %v727 = vtanh.pop %v425
        %v728 = vtanh.pop %v430
        %v729 = vtanh.pop %v435
        %v730 = vtanh.pop %v440
        %v731 = vtanh.pop %v445
        %v732 = vtanh.pop %v450
        %v733 = vtanh.pop %v455
        %v734 = vtanh.pop %v460
        %v735 = vtanh.pop %v465
        %v736 = vtanh.pop %v470
        %v737 = vtanh.pop %v475
        %v738 = vtanh.pop %v480
        %v739 = vtanh.pop %v485
        %v740 = vtanh.pop %v490
        %v741 = vtanh.pop %v495
        %v742 = vtanh.pop %v500
        %v743 = vtanh.pop %v505
        %v744 = vtanh.pop %v510
        %v745 = vtanh.pop %v515
        %v746 = vtanh.pop %v520
        %v747 = vtanh.pop %v525
        %v748 = vtanh.pop %v530
        %v749 = vtanh.pop %v535
        %v750 = vtanh.pop %v540
        %v751 = vtanh.pop %v545
        %v752 = vtanh.pop %v550
        %v753 = vtanh.pop %v555
        %v754 = vtanh.pop %v560
        %v755 = vtanh.pop %v565
        %v756 = vtanh.pop %v570
        %v757 = vtanh.pop %v575
        %v758 = vtanh.pop %v580
        %v759 = vtanh.pop %v585
        %v760 = vtanh.pop %v590
        %v761 = vtanh.pop %v595
        %v762 = vtanh.pop %v600
        %v763 = vtanh.pop %v605
        %v764 = vtanh.pop %v610
        %v765 = vtanh.pop %v615
        %v766 = vtanh.pop %v620
        %v767 = vtanh.pop %v625
        %v768 = vtanh.pop %v630
        %v769 = vtanh.pop %v635
        %v770 = vtanh.pop %v640
        %v771 = vtanh.pop %v645
        %v772 = vtanh.pop %v650
        %v773 = vtanh.pop %v655
        %v774 = vtanh.pop %v660
        %v775 = vtanh.pop %v665
        %v776 = vtanh.pop %v670
        %v777 = vtanh.pop %v675
        %v778 = vtanh.pop %v680
        %v779 = vtanh.pop %v685
        %v780 = vtanh.pop %v690
        %v781 = vtanh.pop %v695
        %v782 = vtanh.pop %v700
        %v783 = vtanh.pop %v705
        %v784 = vtanh.pop %v710
        %v785 = vtanh.pop %v715
        %v786 = vtanh.pop %v720
        %v787 = vld [vmem:[%s3] sm:$0x1]
        %v789 = vlaneseq
        %v790 = vshrl.u32 %v789, 7
        %v791 = vsub.s32 0, %v790
        %v792 = vrot.slane %v787, %v791
        %v794 = vmul.f32 %v723, %v792
        %v795 = vmul.f32 %v724, %v792
        %v796 = vmul.f32 %v725, %v792
        %v797 = vmul.f32 %v726, %v792
        %v798 = vmul.f32 %v727, %v792
        %v799 = vmul.f32 %v728, %v792
        %v800 = vmul.f32 %v729, %v792
        %v801 = vmul.f32 %v730, %v792
        %v802 = vmul.f32 %v731, %v792
        %v803 = vmul.f32 %v732, %v792
        %v804 = vmul.f32 %v733, %v792
        %v805 = vmul.f32 %v734, %v792
        %v806 = vmul.f32 %v735, %v792
        %v807 = vmul.f32 %v736, %v792
        %v808 = vmul.f32 %v737, %v792
        %v809 = vmul.f32 %v738, %v792
        %v810 = vmul.f32 %v739, %v792
        %v811 = vmul.f32 %v740, %v792
        %v812 = vmul.f32 %v741, %v792
        %v813 = vmul.f32 %v742, %v792
        %v814 = vmul.f32 %v743, %v792
        %v815 = vmul.f32 %v744, %v792
        %v816 = vmul.f32 %v745, %v792
        %v817 = vmul.f32 %v746, %v792
        %v818 = vmul.f32 %v747, %v792
        %v819 = vmul.f32 %v748, %v792
        %v820 = vmul.f32 %v749, %v792
        %v821 = vmul.f32 %v750, %v792
        %v822 = vmul.f32 %v751, %v792
        %v823 = vmul.f32 %v752, %v792
        %v824 = vmul.f32 %v753, %v792
        %v825 = vmul.f32 %v754, %v792
        %v826 = vmul.f32 %v755, %v792
        %v827 = vmul.f32 %v756, %v792
        %v828 = vmul.f32 %v757, %v792
        %v829 = vmul.f32 %v758, %v792
        %v830 = vmul.f32 %v759, %v792
        %v831 = vmul.f32 %v760, %v792
        %v832 = vmul.f32 %v761, %v792
        %v833 = vmul.f32 %v762, %v792
        %v834 = vmul.f32 %v763, %v792
        %v835 = vmul.f32 %v764, %v792
        %v836 = vmul.f32 %v765, %v792
        %v837 = vmul.f32 %v766, %v792
        %v838 = vmul.f32 %v767, %v792
        %v839 = vmul.f32 %v768, %v792
        %v840 = vmul.f32 %v769, %v792
        %v841 = vmul.f32 %v770, %v792
        %v842 = vmul.f32 %v771, %v792
        %v843 = vmul.f32 %v772, %v792
        %v844 = vmul.f32 %v773, %v792
        %v845 = vmul.f32 %v774, %v792
        %v846 = vmul.f32 %v775, %v792
        %v847 = vmul.f32 %v776, %v792
        %v848 = vmul.f32 %v777, %v792
        %v849 = vmul.f32 %v778, %v792
        %v850 = vmul.f32 %v779, %v792
        %v851 = vmul.f32 %v780, %v792
        %v852 = vmul.f32 %v781, %v792
        %v853 = vmul.f32 %v782, %v792
        %v854 = vmul.f32 %v783, %v792
        %v855 = vmul.f32 %v784, %v792
        %v856 = vmul.f32 %v785, %v792
        %v857 = vmul.f32 %v786, %v792
        %v858 = vadd.f32 %v794, %v795
        %v859 = vadd.f32 %v858, %v796
        %v860 = vadd.f32 %v859, %v797
        %v861 = vadd.f32 %v860, %v798
        %v862 = vadd.f32 %v861, %v799
        %v863 = vadd.f32 %v862, %v800
        %v864 = vadd.f32 %v863, %v801
        %v865 = vadd.f32 %v864, %v802
        %v866 = vadd.f32 %v865, %v803
        %v867 = vadd.f32 %v866, %v804
        %v868 = vadd.f32 %v867, %v805
        %v869 = vadd.f32 %v868, %v806
        %v870 = vadd.f32 %v869, %v807
        %v871 = vadd.f32 %v870, %v808
        %v872 = vadd.f32 %v871, %v809
        %v873 = vrot.slane %v872, 4
        %v874 = vadd.f32 %v872, %v873
        %v875 = vrot.slane %v874, 2
        %v876 = vadd.f32 %v874, %v875
        %v877 = vrot.slane %v876, 1
        %v878 = vadd.f32 %v876, %v877
        %v879 = vadd.f32 %v810, %v811
        %v880 = vadd.f32 %v879, %v812
        %v881 = vadd.f32 %v880, %v813
        %v882 = vadd.f32 %v881, %v814
        %v883 = vadd.f32 %v882, %v815
        %v884 = vadd.f32 %v883, %v816
        %v885 = vadd.f32 %v884, %v817
        %v886 = vadd.f32 %v885, %v818
        %v887 = vadd.f32 %v886, %v819
        %v888 = vadd.f32 %v887, %v820
        %v889 = vadd.f32 %v888, %v821
        %v890 = vadd.f32 %v889, %v822
        %v891 = vadd.f32 %v890, %v823
        %v892 = vadd.f32 %v891, %v824
        %v893 = vadd.f32 %v892, %v825
        %v894 = vrot.slane %v893, 4
        %v895 = vadd.f32 %v893, %v894
        %v896 = vrot.slane %v895, 2
        %v897 = vadd.f32 %v895, %v896
        %v898 = vrot.slane %v897, 1
        %v899 = vadd.f32 %v897, %v898
        %v900 = vadd.f32 %v826, %v827
        %v901 = vadd.f32 %v900, %v828
        %v902 = vadd.f32 %v901, %v829
        %v903 = vadd.f32 %v902, %v830
        %v904 = vadd.f32 %v903, %v831
        %v905 = vadd.f32 %v904, %v832
        %v906 = vadd.f32 %v905, %v833
        %v907 = vadd.f32 %v906, %v834
        %v908 = vadd.f32 %v907, %v835
        %v909 = vadd.f32 %v908, %v836
        %v910 = vadd.f32 %v909, %v837
        %v911 = vadd.f32 %v910, %v838
        %v912 = vadd.f32 %v911, %v839
        %v913 = vadd.f32 %v912, %v840
        %v914 = vadd.f32 %v913, %v841
        %v915 = vrot.slane %v914, 4
        %v916 = vadd.f32 %v914, %v915
        %v917 = vrot.slane %v916, 2
        %v918 = vadd.f32 %v916, %v917
        %v919 = vrot.slane %v918, 1
        %v920 = vadd.f32 %v918, %v919
        %v921 = vadd.f32 %v842, %v843
        %v922 = vadd.f32 %v921, %v844
        %v923 = vadd.f32 %v922, %v845
        %v924 = vadd.f32 %v923, %v846
        %v925 = vadd.f32 %v924, %v847
        %v926 = vadd.f32 %v925, %v848
        %v927 = vadd.f32 %v926, %v849
        %v928 = vadd.f32 %v927, %v850
        %v929 = vadd.f32 %v928, %v851
        %v930 = vadd.f32 %v929, %v852
        %v931 = vadd.f32 %v930, %v853
        %v932 = vadd.f32 %v931, %v854
        %v933 = vadd.f32 %v932, %v855
        %v934 = vadd.f32 %v933, %v856
        %v935 = vadd.f32 %v934, %v857
        %v936 = vrot.slane %v935, 4
        %v937 = vadd.f32 %v935, %v936
        %v938 = vrot.slane %v937, 2
        %v939 = vadd.f32 %v937, %v938
        %v940 = vrot.slane %v939, 1
        %v941 = vadd.f32 %v939, %v940
        %vm946 = vcmask 1041409
        %v947 = vsel %vm946, %v899, %v878
        %vm948 = vcmask 1042434
        %v949 = vsel %vm948, %v920, %v947
        %vm950 = vcmask 1043459
        %v951 = vsel %vm950, %v941, %v949
        %vm953 = vcmask 1043456
        %v954 = vsel %vm953, %v951, 0.0
        %955 = vadd.xlane.f32.xlu0 %v954
        %v956 = vpop.xlane.xlu0 %955
        %v957 = vld [vmem:[#allocation7] sm:$0x1]
        %v959 = vlaneseq
        %v960 = vshrl.u32 %v959, 7
        %v961 = vsub.s32 0, %v960
        %v962 = vrot.slane %v956, %v961
        %v963 = vlaneseq
        %v964 = vshrl.u32 %v963, 7
        %v965 = vsub.s32 1, %v964
        %v966 = vrot.slane %v956, %v965
        %v967 = vlaneseq
        %v968 = vshrl.u32 %v967, 7
        %v969 = vsub.s32 2, %v968
        %v970 = vrot.slane %v956, %v969
        %v971 = vlaneseq
        %v972 = vshrl.u32 %v971, 7
        %v973 = vsub.s32 3, %v972
        %v974 = vrot.slane %v956, %v973
        %v975 = vcombine.low %v962, %v966
        %v976 = vcombine.low %v970, %v974
        %v978 = vunpack.c.l.s4 1966171168
        %v979 = vunpack.c.0.s8 %v978
        %v980 = vlaneseq
        %v981 = vshrl.u32 %v980, 7
        %v982 = vsub.s32 %v979, %v981
        %v983 = vrot.slane %v975, %v982
        %v985 = vunpack.c.l.s4 1966171168
        %v986 = vunpack.c.0.s8 %v985
        %v987 = vlaneseq
        %v988 = vshrl.u32 %v987, 7
        %v989 = vsub.s32 %v986, %v988
        %v990 = vrot.slane %v976, %v989
        %v991 = vcombine.low %v983, %v990
        %v993 = vunpack.c.l.s4 1966171168
        %v994 = vunpack.c.0.s8 %v993
        %v995 = vlaneseq
        %v996 = vshrl.u32 %v995, 7
        %v997 = vsub.s32 %v994, %v996
        %v998 = vrot.slane %v991, %v997
        %999 = vset.pattern.permute.xlu0 0
        %1000 = vperm.xlu0 %999, %v998
        %v1001 = vpop.permute.xlu0 %1000
        %v1002 = vlaneseq
        %v1003 = vand.u32 %v1002, 127
        %v1004 = vlaneseq
        %v1005 = vshrl.u32 %v1004, 7
        %v1006 = vsub.s32 %v1003, %v1005
        %v1007 = vrot.slane %v1001, %v1006
        %v1009 = vunpack.c.l.s4 1966171168
        %v1010 = vunpack.c.0.s8 %v1009
        %v1011 = vlaneseq
        %v1012 = vshrl.u32 %v1011, 7
        %v1013 = vsub.s32 %v1010, %v1012
        %v1014 = vrot.slane %v1007, %v1013
        %v1016 = vunpack.c.l.s4 1966171168
        %v1017 = vunpack.c.0.s8 %v1016
        %v1018 = vlaneseq
        %v1019 = vshrl.u32 %v1018, 7
        %v1020 = vsub.s32 %v1017, %v1019
        %v1021 = vrot.slane %v1014, %v1020
        %v1023 = vadd.f32 %v957, %v1021
        %vm1024 = vcmask 24576
        %1025 = vst.msk [vmem:[#allocation7] sm:$0x1] %vm1024, %v1023
        %p1026 = scmp.eq.s32.totalorder %s20, 1
        // Predicated region
        $region49: #{tpu_custom_call.1} parent=35 // pred_check
          %p1027 = pneg %p1026
        $region50: #{tpu_custom_call.1} parent=35 // pred_check_branch
          %1029 = sbr.rel (%p1027) target = $region52
        $region51: #{tpu_custom_call.1} parent=35 // pred_region
          %v1030 = vld [vmem:[#allocation7] sm:$0x1]
          %v1031 = vmul.f32 %v1030, 0.00390625
          %v1032 = vsel %vm1024, %v1031, -inf
          %1033 = vmax.xlane.f32.xlu0 %v1032
          %v1034 = vpop.xlane.xlu0 %1033
          %v1035 = vsub.f32 %v1031, %v1034
          %v1036 = vmul.f32 %v1035, 1.442695
          %v1037 = vpow.pop %v1036
          %v1038 = vsel %vm1024, %v1037, 0.0
          %1039 = vadd.xlane.f32.xlu0 %v1038
          %v1040 = vpop.xlane.xlu0 %1039
          %v1041 = vrcp.pop %v1040
          %v1042 = vmul.f32 %v1037, %v1041
          %1043 = vst.msk [vmem:[#allocation7] sm:$0x1] %vm1024, %v1042
        $region52: #{tpu_custom_call.1} parent=35 // pred_fallthru
          _
        // Predicated region
        $region53: #{tpu_custom_call.1} parent=35 // pred_check
          %p1044 = pneg %p122
        $region54: #{tpu_custom_call.1} parent=35 // pred_check_branch
          %1046 = sbr.rel (%p1044) target = $region56
        $region55: #{tpu_custom_call.1} parent=35 // pred_region
          %s1048 = ssub.s32 16, 16
          %1049 = vsyncadd [#allocation4], %s1048
          %s1051 = sshll.u32 [#allocation7], 4
          %s1052 = int_to_ptr.vmem [resolvable:$true] %s1051
          %1054 = dma.vmem_to_hbm [thread:$0]  %s1052, 16, %s4, [#allocation4]
        $region56: #{tpu_custom_call.1} parent=35 // pred_fallthru
          _
        // Predicated region
        $region57: #{tpu_custom_call.1} parent=35 // pred_check
          %p1055 = pneg %p122
        $region58: #{tpu_custom_call.1} parent=35 // pred_check_branch
          %1057 = sbr.rel (%p1055) target = $region60
        $region59: #{tpu_custom_call.1} parent=35 // pred_region
          %1058 = dma.done [#allocation4], 16
        $region60: #{tpu_custom_call.1} parent=35 // pred_fallthru
          _
      $region36: #{tpu_custom_call.1} parent=5 // pred_fallthru
        _
      %p1059 = scmp.le.s32.totalorder 2, %s15
      // Predicated region
      $region61: #{tpu_custom_call.1} parent=5 // pred_check
        %p1060 = pneg %p1059
      $region62: #{tpu_custom_call.1} parent=5 // pred_check_branch
        %1062 = sbr.rel (%p1060) target = $region64
      $region63: #{tpu_custom_call.1} parent=5 // pred_region
        %s1063 = ssub.s32 %s15, 2
      $region64: #{tpu_custom_call.1} parent=5 // pred_fallthru
        _
    $region6: #{tpu_custom_call.1} parent=1 // loop_footer
      %s19 = sadd.s32 1, %s15
    $region7: #{tpu_custom_call.1} parent=1 // loop_footer_branch
      %14 = sbr.rel target = $region3
    $region8: #{tpu_custom_call.1} parent=1 // loop_exit
      _
    %1064 = vsyncpa [#allocation3], 1
    %s1065 = scalar_lea.sflag [#allocation3], 1
    %1066 = vsyncpa %s1065, 1
    %1067 = vsyncpa [#allocation6], 1
    %1068 = vsyncpa [#allocation4], 1
    %s1069 = scalar_lea.sflag [#allocation4], 1
    %1070 = vsyncpa %s1069, 1

</llo_original>
